<compile_context>
chip_gen: v7x
topology: tpu7x:2x2x1
jax: 0.10.0
libtpu: 0.0.40
codegen_flags: <defaults>
</compile_context>

<pallas_src>
import math
from functools import partial

import jax
import jax.numpy as jnp
from jax import lax
from jax.experimental import pallas as pl
from jax.experimental.pallas import tpu as pltpu


_LOG_CLAMP = math.log(1e-16)  # clamp(conf, 1e-16) before log  ==  max(log_conf, log(1e-16))


def _round_up(n, m):
    return ((n + m - 1) // m) * m


def temp_scale_kernel(x_ref, w_ref, b_ref, temp_ref, out_ref, acc_ref, *, num_classes):
    # --- K-reduction into f32 accumulator (MXU, bf16 inputs) ---------------
    @pl.when(pl.program_id(1) == 0)
    def _():
        acc_ref[...] = jnp.zeros_like(acc_ref)

    acc_ref[...] += jnp.dot(
        x_ref[...], w_ref[...], preferred_element_type=jnp.float32
    )

    # --- finalize: bias, masked softmax (LSE form), temp scale -------------
    @pl.when(pl.program_id(1) == pl.num_programs(1) - 1)
    def _():
        logits = acc_ref[...] + b_ref[...]
        # Mask lane-padding columns to -inf so they contribute 0 to the sum.
        col = lax.broadcasted_iota(jnp.int32, logits.shape, 1)
        logits = jnp.where(col < num_classes, logits, -jnp.inf)

        m = jnp.max(logits, axis=1, keepdims=True)
        e = jnp.exp(logits - m)
        lse = jnp.log(jnp.sum(e, axis=1, keepdims=True))
        log_conf = logits - (m + lse)                       # log(softmax)
        log_conf = jnp.maximum(log_conf, jnp.float32(_LOG_CLAMP))

        out_ref[...] = log_conf * temp_ref[0, 0]


def temp_scale_newton_forward(x_nchw, w, b, temp):
    """x_nchw: [B, C, H, W]; w: [F, NC]; b: [NC]; temp: scalar."""
    B = x_nchw.shape[0]
    F_dim, NC = w.shape
    x_flat = x_nchw.reshape(B, -1)  # glue: flatten NCHW (matches torch .view(B, -1))
    assert x_flat.shape[1] == F_dim

    # --- tile sizes ---------------------------------------------------------
    NC_PAD = _round_up(NC, 128)                 # lane-dense class dim
    if B >= 512:
        TB = 512
    elif B >= 128:
        TB = 128
    else:
        TB = _round_up(B, 8)                    # sublane-aligned for tiny batches
    B_pad = _round_up(B, TB)

    if F_dim <= 8192:                           # W fully resident in VMEM
        TK = F_dim
        F_pad = F_dim
    else:                                       # K-tiled for large F (v7x 64MiB budget)
        TK = 2048
        F_pad = _round_up(F_dim, TK)

    # --- operand prep: bf16 MXU inputs, zero-padded tiles --------------------
    x_bf = x_flat.astype(jnp.bfloat16)
    w_bf = w.astype(jnp.bfloat16)
    x_p = jnp.pad(x_bf, ((0, B_pad - B), (0, F_pad - F_dim)))
    w_p = jnp.pad(w_bf, ((0, F_pad - F_dim), (0, NC_PAD - NC)))
    b_p = jnp.pad(b.astype(jnp.float32).reshape(1, NC), ((0, 0), (0, NC_PAD - NC)))
    temp2d = jnp.asarray(temp, jnp.float32).reshape(1, 1)

    nb = B_pad // TB
    nk = F_pad // TK

    out = pl.pallas_call(
        partial(temp_scale_kernel, num_classes=NC),
        out_shape=jax.ShapeDtypeStruct((B_pad, NC_PAD), jnp.float32),
        grid_spec=pltpu.PrefetchScalarGridSpec(
            num_scalar_prefetch=0,
            grid=(nb, nk),
            in_specs=[
                pl.BlockSpec((TB, TK), lambda i, k: (i, k)),          # x tile
                pl.BlockSpec((TK, NC_PAD), lambda i, k: (k, 0)),      # W tile (resident if nk==1)
                pl.BlockSpec((1, NC_PAD), lambda i, k: (0, 0)),       # bias row (lane-dense)
                pl.BlockSpec((1, 1), lambda i, k: (0, 0),
                             memory_space=pltpu.MemorySpace.SMEM),    # temp scalar
            ],
            out_specs=pl.BlockSpec((TB, NC_PAD), lambda i, k: (i, 0)),
            scratch_shapes=[pltpu.VMEM((TB, NC_PAD), jnp.float32)],   # f32 accumulator
        ),
        compiler_params=pltpu.CompilerParams(
            dimension_semantics=("parallel", "arbitrary"),
        ),
    )(x_p, w_p, b_p, temp2d)

    return out[:B, :NC]


def reference_forward(x_nchw, w, b, temp):
    """Pure-JAX reference matching the PyTorch module (bf16 MXU matmul)."""
    B = x_nchw.shape[0]
    x_flat = x_nchw.reshape(B, -1).astype(jnp.bfloat16)
    logits = jnp.dot(
        x_flat, w.astype(jnp.bfloat16), preferred_element_type=jnp.float32
    ) + b[None, :].astype(jnp.float32)
    conf = jax.nn.softmax(logits, axis=1)
    conf = jnp.maximum(conf, 1e-16)
    return jnp.log(conf) * jnp.asarray(temp, jnp.float32)


if __name__ == "__main__":
    B, C, H, W = 2, 4, 16, 16
    F_DIM = C * H * W
    NUM_CLASSES = 10

    key = jax.random.PRNGKey(0)
    kx, kw, kb = jax.random.split(key, 3)

    x = jax.random.normal(kx, (B, C, H, W), dtype=jnp.float32)
    w = jax.random.normal(kw, (F_DIM, NUM_CLASSES), dtype=jnp.float32) * 0.02
    b = jax.random.normal(kb, (NUM_CLASSES,), dtype=jnp.float32) * 0.01
    temp = jnp.ones((1,), jnp.float32)  # torch.nn.Parameter(torch.ones(1))

    out = temp_scale_newton_forward(x, w, b, temp[0])
    out = jax.block_until_ready(out)

    ref = reference_forward(x, w, b, temp[0])
    assert out.shape == (B, NUM_CLASSES)
    assert bool(jnp.all(jnp.isfinite(out)))
    assert jnp.allclose(out, ref, atol=2e-3, rtol=2e-3)

    print("KERNEL_OK")
</pallas_src>

<mosaic_0001>
module attributes {stable_mosaic.version = 11 : i64} {
  func.func @temp_scale_kernel(%arg0: i32, %arg1: i32, %arg2: memref<8x1024xbf16, #tpu.memory_space<vmem>>, %arg3: memref<1024x128xbf16, #tpu.memory_space<vmem>>, %arg4: memref<1x128xf32, #tpu.memory_space<vmem>>, %arg5: memref<1x1xf32, #tpu.memory_space<smem>>, %arg6: memref<8x128xf32, #tpu.memory_space<vmem>>, %arg7: memref<8x128xf32, #tpu.memory_space<vmem>>) attributes {dimension_semantics = [#tpu.dimension_semantics<parallel>, #tpu.dimension_semantics<arbitrary>], iteration_bounds = array<i64: 1, 1>, scalar_prefetch = 0 : i64, scratch_operands = 1 : i64, tpu.core_type = #tpu.core_type<tc>, window_params = [{transform_indices = @transform_0, window_bounds = array<i64: 8, 1024>}, {transform_indices = @transform_1, window_bounds = array<i64: 1024, 128>}, {pipeline_mode = #tpu.pipeline_mode<synchronous>, transform_indices = @transform_2, window_bounds = array<i64: 1, 128>}, {transform_indices = @transform_3, window_bounds = array<i64: 1, 1>}, {transform_indices = @transform_4, window_bounds = array<i64: 8, 128>}]} {
    %c0_i32 = arith.constant 0 : i32
    %0 = arith.cmpi eq, %arg1, %c0_i32 : i32
    %1 = arith.extui %0 : i1 to i32
    %c0_i32_0 = arith.constant 0 : i32
    %2 = arith.cmpi ne, %1, %c0_i32_0 : i32
    scf.if %2 {
      %cst_10 = arith.constant 0.000000e+00 : f32
      %12 = vector.broadcast %cst_10 : f32 to vector<8x128xf32>
      %c0_11 = arith.constant 0 : index
      %c0_12 = arith.constant 0 : index
      %13 = vector.load %arg7[%c0_11, %c0_12] : memref<8x128xf32, #tpu.memory_space<vmem>>, vector<8x128xf32>
      tpu.vector_store %arg7[%c0_11, %c0_12], %12 {strides = array<i32>} : memref<8x128xf32, #tpu.memory_space<vmem>>, vector<8x128xf32>,
    } else {
    }
    %c0 = arith.constant 0 : index
    %c0_1 = arith.constant 0 : index
    %3 = vector.load %arg7[%c0, %c0_1] : memref<8x128xf32, #tpu.memory_space<vmem>>, vector<8x128xf32>
    %c0_2 = arith.constant 0 : index
    %c0_3 = arith.constant 0 : index
    %4 = vector.load %arg2[%c0_2, %c0_3] : memref<8x1024xbf16, #tpu.memory_space<vmem>>, vector<8x1024xbf16>
    %c0_4 = arith.constant 0 : index
    %c0_5 = arith.constant 0 : index
    %5 = vector.load %arg3[%c0_4, %c0_5] : memref<1024x128xbf16, #tpu.memory_space<vmem>>, vector<1024x128xbf16>
    %cst = arith.constant dense<0.000000e+00> : vector<8x128xf32>
    %6 = tpu.matmul %4, %5, %cst {dimension_numbers = #tpu.dot_dimension_numbers<[1], [0], [0], [1], [0, 0, 1, 1], [], []>} : vector<8x1024xbf16>, vector<1024x128xbf16>, vector<8x128xf32> -> vector<8x128xf32>
    %7 = arith.addf %3, %6 : vector<8x128xf32>
    %c0_6 = arith.constant 0 : index
    %c0_7 = arith.constant 0 : index
    %8 = vector.load %arg7[%c0_6, %c0_7] : memref<8x128xf32, #tpu.memory_space<vmem>>, vector<8x128xf32>
    tpu.vector_store %arg7[%c0_6, %c0_7], %7 {strides = array<i32>} : memref<8x128xf32, #tpu.memory_space<vmem>>, vector<8x128xf32>,
    %c0_i32_8 = arith.constant 0 : i32
    %9 = arith.cmpi eq, %arg1, %c0_i32_8 : i32
    %10 = arith.extui %9 : i1 to i32
    %c0_i32_9 = arith.constant 0 : i32
    %11 = arith.cmpi ne, %10, %c0_i32_9 : i32
    scf.if %11 {
      %c0_10 = arith.constant 0 : index
      %c0_11 = arith.constant 0 : index
      %12 = vector.load %arg7[%c0_10, %c0_11] : memref<8x128xf32, #tpu.memory_space<vmem>>, vector<8x128xf32>
      %c0_12 = arith.constant 0 : index
      %c0_13 = arith.constant 0 : index
      %13 = vector.load %arg4[%c0_12, %c0_13] : memref<1x128xf32, #tpu.memory_space<vmem>>, vector<1x128xf32>
      %14 = vector.broadcast %13 : vector<1x128xf32> to vector<8x128xf32>
      %15 = arith.addf %12, %14 : vector<8x128xf32>
      %16 = tpu.iota {dimensions = array<i32: 1>} : vector<8x128xi32>
      %c10_i32 = arith.constant 10 : i32
      %17 = vector.broadcast %c10_i32 : i32 to vector<8x128xi32>
      %18 = arith.cmpi slt, %16, %17 : vector<8x128xi32>
      %cst_14 = arith.constant 0xFF800000 : f32
      %19 = vector.broadcast %cst_14 : f32 to vector<8x128xf32>
      %20 = arith.select %18, %15, %19 : vector<8x128xi1>, vector<8x128xf32>
      %cst_15 = arith.constant dense<0xFF800000> : vector<8xf32>
      %21 = vector.multi_reduction <maximumf>, %20, %cst_15 [1] : vector<8x128xf32> to vector<8xf32>
      %22 = vector.shape_cast %21 : vector<8xf32> to vector<8x1xf32>
      %23 = vector.broadcast %22 : vector<8x1xf32> to vector<8x128xf32>
      %24 = arith.subf %20, %23 : vector<8x128xf32>
      %25 = math.exp %24 : vector<8x128xf32>
      %cst_16 = arith.constant dense<0.000000e+00> : vector<8xf32>
      %26 = vector.multi_reduction <add>, %25, %cst_16 [1] : vector<8x128xf32> to vector<8xf32>
      %27 = vector.shape_cast %26 : vector<8xf32> to vector<8x1xf32>
      %28 = math.log %27 : vector<8x1xf32>
      %29 = arith.addf %22, %28 : vector<8x1xf32>
      %30 = vector.broadcast %29 : vector<8x1xf32> to vector<8x128xf32>
      %31 = arith.subf %20, %30 : vector<8x128xf32>
      %cst_17 = arith.constant -36.841362 : f32
      %32 = vector.broadcast %cst_17 : f32 to vector<8x128xf32>
      %33 = arith.maximumf %31, %32 : vector<8x128xf32>
      %c0_18 = arith.constant 0 : index
      %c0_19 = arith.constant 0 : index
      %34 = memref.load %arg5[%c0_18, %c0_19] : memref<1x1xf32, #tpu.memory_space<smem>>
      %35 = vector.broadcast %34 : f32 to vector<8x128xf32>
      %36 = arith.mulf %33, %35 : vector<8x128xf32>
      %c0_20 = arith.constant 0 : index
      %c0_21 = arith.constant 0 : index
      %37 = vector.load %arg6[%c0_20, %c0_21] : memref<8x128xf32, #tpu.memory_space<vmem>>, vector<8x128xf32>
      tpu.vector_store %arg6[%c0_20, %c0_21], %36 {strides = array<i32>} : memref<8x128xf32, #tpu.memory_space<vmem>>, vector<8x128xf32>,
    } else {
    }
    return
  }
  func.func @transform_0(%arg0: i32, %arg1: i32) -> (i32, i32) {
    %c0_i32 = arith.constant 0 : i32
    return %arg0, %arg1 : i32, i32
  }
  func.func @transform_1(%arg0: i32, %arg1: i32) -> (i32, i32) {
    %c0_i32 = arith.constant 0 : i32
    %c0_i32_0 = arith.constant 0 : i32
    return %arg1, %c0_i32 : i32, i32
  }
  func.func @transform_2(%arg0: i32, %arg1: i32) -> (i32, i32) {
    %c0_i32 = arith.constant 0 : i32
    %c0_i32_0 = arith.constant 0 : i32
    %c0_i32_1 = arith.constant 0 : i32
    return %c0_i32, %c0_i32_0 : i32, i32
  }
  func.func @transform_3(%arg0: i32, %arg1: i32) -> (i32, i32) {
    %c0_i32 = arith.constant 0 : i32
    %c0_i32_0 = arith.constant 0 : i32
    %c0_i32_1 = arith.constant 0 : i32
    return %c0_i32, %c0_i32_0 : i32, i32
  }
  func.func @transform_4(%arg0: i32, %arg1: i32) -> (i32, i32) {
    %c0_i32 = arith.constant 0 : i32
    %c0_i32_0 = arith.constant 0 : i32
    return %arg0, %c0_i32 : i32, i32
  }
}

</mosaic_0001>

<llo_original>
// kernel: tpu_custom_call.1
$region0: #{tpu_custom_call.1}
  #allocation0 [shape = 'u32[]', space=smem, size = 0x4, offset = 0x4, fixed_abs, tag = 'smem constant byte address 0x4 - core index']
  #allocation1 [shape = 'u32[144,128]{1,0:T(1,128)}', space=vmem, size = 0x12000, scoped, tag = 'internal scratch']
  #allocation2 [shape = 'f32[8,128]{1,0:T(8,128)}', space=vmem, size = 0x1000, scoped, tag = 'scratch operand']
  #allocation3 [shape = 'f32[1,1]{1,0:T(1,128)S(6)}', space=smem, size = 0x200, scoped, tag = 'scoped memory for tpu_custom_call.1']
  %s0 = inlined_call_operand.hbm [shape: bf16[8,1024], index: 0, kind: input, shape index: {}]
  %s1 = inlined_call_operand.hbm [shape: bf16[1024,128], index: 1, kind: input, shape index: {}]
  %s2 = inlined_call_operand.vmem [shape: f32[1,128], index: 2, kind: input, shape index: {}]
  %s3 = inlined_call_operand.<no memory space> [shape: f32[1,1], index: 3, kind: input, shape index: {}]
  %s4 = inlined_call_operand.hbm [shape: f32[8,128], index: 4, kind: output, shape index: {}]
  %s5 = sld [smem:[#allocation0]]
  $region42: #{tpu_custom_call.1} parent=0
    _
  %s7 = ssub.s32 1, %s5
  %s8 = scalar_select 0, %s7, %s5
  %9 = sst [smem:[#allocation3]] %s3
  $region1: #{tpu_custom_call.1} parent=0
    #allocation4 [shape = 'u8[16384]{0}', space=vmem, size = 0x4000, scoped, tag = 'input window, operand 0, single buffered']
    #allocation5 [shape = 's32[1]{0}', space=sflag, size = 0x4, scoped, tag = 'scoped memory for tpu_custom_call.1']
    #allocation6 [shape = 's32[1]{0}', space=sflag, size = 0x4, scoped, tag = 'scoped memory for tpu_custom_call.1']
    #allocation7 [shape = 'u8[262144]{0}', space=vmem, size = 0x40000, scoped, tag = 'input window, operand 1, single buffered']
    #allocation8 [shape = 's32[1]{0}', space=sflag, size = 0x4, scoped, tag = 'scoped memory for tpu_custom_call.1']
    #allocation9 [shape = 'u8[4096]{0}', space=vmem, size = 0x1000, scoped, tag = 'output window, operand 0, single buffered']
    %10 = vsyncpa [#allocation5], 0
    %11 = vsyncpa [#allocation8], 0
    %12 = vsyncpa [#allocation6], 0
    // Predicated region
    $region2: #{tpu_custom_call.1} parent=1 // pred_check
      _
    $region3: #{tpu_custom_call.1} parent=1 // pred_check_branch
      %14 = sbr.rel (0) target = $region5
    $region4: #{tpu_custom_call.1} parent=1 // pred_region
      %s16 = ssub.s32 512, 512
      %17 = vsyncadd [#allocation5], %s16
      %s19 = sshll.u32 [#allocation4], 4
      %s20 = int_to_ptr.vmem [resolvable:$true] %s19
      %22 = dma.hbm_to_vmem [thread:$0]  %s0, 512, %s20, [#allocation5]
    $region5: #{tpu_custom_call.1} parent=1 // pred_fallthru
      _
    // Predicated region
    $region6: #{tpu_custom_call.1} parent=1 // pred_check
      _
    $region7: #{tpu_custom_call.1} parent=1 // pred_check_branch
      %24 = sbr.rel (0) target = $region9
    $region8: #{tpu_custom_call.1} parent=1 // pred_region
      %s26 = ssub.s32 8192, 8192
      %27 = vsyncadd [#allocation8], %s26
      %s28 = sshll.u32 [#allocation7], 4
      %s29 = int_to_ptr.vmem [resolvable:$true] %s28
      %34 = dma.hbm_to_vmem [thread:$0]  %s1, 8192, %s29, [#allocation8], 64, 64, 4
    $region9: #{tpu_custom_call.1} parent=1 // pred_fallthru
      _
    // Predicated region
    $region10: #{tpu_custom_call.1} parent=1 // pred_check
      _
    $region11: #{tpu_custom_call.1} parent=1 // pred_check_branch
      %36 = sbr.rel (0) target = $region13
    $region12: #{tpu_custom_call.1} parent=1 // pred_region
      _
    $region13: #{tpu_custom_call.1} parent=1 // pred_fallthru
      _
    // Predicated region
    $region14: #{tpu_custom_call.1} parent=1 // pred_check
      _
    $region15: #{tpu_custom_call.1} parent=1 // pred_check_branch
      %38 = sbr.rel (0) target = $region17
    $region16: #{tpu_custom_call.1} parent=1 // pred_region
      _
    $region17: #{tpu_custom_call.1} parent=1 // pred_fallthru
      _
    // Predicated region
    $region18: #{tpu_custom_call.1} parent=1 // pred_check
      _
    $region19: #{tpu_custom_call.1} parent=1 // pred_check_branch
      %40 = sbr.rel (0) target = $region21
    $region20: #{tpu_custom_call.1} parent=1 // pred_region
      %41 = dma.done [#allocation5], 512
    $region21: #{tpu_custom_call.1} parent=1 // pred_fallthru
      _
    // Predicated region
    $region22: #{tpu_custom_call.1} parent=1 // pred_check
      _
    $region23: #{tpu_custom_call.1} parent=1 // pred_check_branch
      %43 = sbr.rel (0) target = $region25
    $region24: #{tpu_custom_call.1} parent=1 // pred_region
      %44 = dma.done [#allocation8], 8192
    $region25: #{tpu_custom_call.1} parent=1 // pred_fallthru
      _
    %p46 = scmp.eq.s32.totalorder 0, 0
    // Predicated region
    $region26: #{tpu_custom_call.1} parent=1 // pred_check
      %p47 = pneg %p46
    $region27: #{tpu_custom_call.1} parent=1 // pred_check_branch
      %49 = sbr.rel (%p47) target = $region29
    $region28: #{tpu_custom_call.1} parent=1 // pred_region
      %50 = vst [vmem:[#allocation2] sm:$0xff] 0.0
    $region29: #{tpu_custom_call.1} parent=1 // pred_fallthru
      _
    %v51 = vld [vmem:[#allocation2] sm:$0xff]
    %v52 = vld [vmem:[#allocation4] sm:$0xff]
    %v53 = vld [vmem:[#allocation4 + $0x8] sm:$0xff]
    %v54 = vld [vmem:[#allocation4 + $0x10] sm:$0xff]
    %v55 = vld [vmem:[#allocation4 + $0x18] sm:$0xff]
    %v56 = vld [vmem:[#allocation7] sm:$0xf]
    %v57 = vld [vmem:[#allocation7 + $0x4] sm:$0xf]
    %v58 = vld [vmem:[#allocation7 + $0x8] sm:$0xf]
    %v59 = vld [vmem:[#allocation7 + $0xc] sm:$0xf]
    %v60 = vld [vmem:[#allocation7 + $0x10] sm:$0xf]
    %v61 = vld [vmem:[#allocation7 + $0x14] sm:$0xf]
    %v62 = vld [vmem:[#allocation7 + $0x18] sm:$0xf]
    %v63 = vld [vmem:[#allocation7 + $0x1c] sm:$0xf]
    %v64 = vld [vmem:[#allocation7 + $0x20] sm:$0xf]
    %v65 = vld [vmem:[#allocation7 + $0x24] sm:$0xf]
    %v66 = vld [vmem:[#allocation7 + $0x28] sm:$0xf]
    %v67 = vld [vmem:[#allocation7 + $0x2c] sm:$0xf]
    %v68 = vld [vmem:[#allocation7 + $0x30] sm:$0xf]
    %v69 = vld [vmem:[#allocation7 + $0x34] sm:$0xf]
    %v70 = vld [vmem:[#allocation7 + $0x38] sm:$0xf]
    %v71 = vld [vmem:[#allocation7 + $0x3c] sm:$0xf]
    %v72 = vld [vmem:[#allocation7 + $0x40] sm:$0xf]
    %v73 = vld [vmem:[#allocation7 + $0x44] sm:$0xf]
    %v74 = vld [vmem:[#allocation7 + $0x48] sm:$0xf]
    %v75 = vld [vmem:[#allocation7 + $0x4c] sm:$0xf]
    %v76 = vld [vmem:[#allocation7 + $0x50] sm:$0xf]
    %v77 = vld [vmem:[#allocation7 + $0x54] sm:$0xf]
    %v78 = vld [vmem:[#allocation7 + $0x58] sm:$0xf]
    %v79 = vld [vmem:[#allocation7 + $0x5c] sm:$0xf]
    %v80 = vld [vmem:[#allocation7 + $0x60] sm:$0xf]
    %v81 = vld [vmem:[#allocation7 + $0x64] sm:$0xf]
    %v82 = vld [vmem:[#allocation7 + $0x68] sm:$0xf]
    %v83 = vld [vmem:[#allocation7 + $0x6c] sm:$0xf]
    %v84 = vld [vmem:[#allocation7 + $0x70] sm:$0xf]
    %v85 = vld [vmem:[#allocation7 + $0x74] sm:$0xf]
    %v86 = vld [vmem:[#allocation7 + $0x78] sm:$0xf]
    %v87 = vld [vmem:[#allocation7 + $0x7c] sm:$0xf]
    %v88 = vld [vmem:[#allocation7 + $0x80] sm:$0xf]
    %v89 = vld [vmem:[#allocation7 + $0x84] sm:$0xf]
    %v90 = vld [vmem:[#allocation7 + $0x88] sm:$0xf]
    %v91 = vld [vmem:[#allocation7 + $0x8c] sm:$0xf]
    %v92 = vld [vmem:[#allocation7 + $0x90] sm:$0xf]
    %v93 = vld [vmem:[#allocation7 + $0x94] sm:$0xf]
    %v94 = vld [vmem:[#allocation7 + $0x98] sm:$0xf]
    %v95 = vld [vmem:[#allocation7 + $0x9c] sm:$0xf]
    %v96 = vld [vmem:[#allocation7 + $0xa0] sm:$0xf]
    %v97 = vld [vmem:[#allocation7 + $0xa4] sm:$0xf]
    %v98 = vld [vmem:[#allocation7 + $0xa8] sm:$0xf]
    %v99 = vld [vmem:[#allocation7 + $0xac] sm:$0xf]
    %v100 = vld [vmem:[#allocation7 + $0xb0] sm:$0xf]
    %v101 = vld [vmem:[#allocation7 + $0xb4] sm:$0xf]
    %v102 = vld [vmem:[#allocation7 + $0xb8] sm:$0xf]
    %v103 = vld [vmem:[#allocation7 + $0xbc] sm:$0xf]
    %v104 = vld [vmem:[#allocation7 + $0xc0] sm:$0xf]
    %v105 = vld [vmem:[#allocation7 + $0xc4] sm:$0xf]
    %v106 = vld [vmem:[#allocation7 + $0xc8] sm:$0xf]
    %v107 = vld [vmem:[#allocation7 + $0xcc] sm:$0xf]
    %v108 = vld [vmem:[#allocation7 + $0xd0] sm:$0xf]
    %v109 = vld [vmem:[#allocation7 + $0xd4] sm:$0xf]
    %v110 = vld [vmem:[#allocation7 + $0xd8] sm:$0xf]
    %v111 = vld [vmem:[#allocation7 + $0xdc] sm:$0xf]
    %v112 = vld [vmem:[#allocation7 + $0xe0] sm:$0xf]
    %v113 = vld [vmem:[#allocation7 + $0xe4] sm:$0xf]
    %v114 = vld [vmem:[#allocation7 + $0xe8] sm:$0xf]
    %v115 = vld [vmem:[#allocation7 + $0xec] sm:$0xf]
    %v116 = vld [vmem:[#allocation7 + $0xf0] sm:$0xf]
    %v117 = vld [vmem:[#allocation7 + $0xf4] sm:$0xf]
    %v118 = vld [vmem:[#allocation7 + $0xf8] sm:$0xf]
    %v119 = vld [vmem:[#allocation7 + $0xfc] sm:$0xf]
    %v120 = vld [vmem:[#allocation7 + $0x100] sm:$0xf]
    %v121 = vld [vmem:[#allocation7 + $0x104] sm:$0xf]
    %v122 = vld [vmem:[#allocation7 + $0x108] sm:$0xf]
    %v123 = vld [vmem:[#allocation7 + $0x10c] sm:$0xf]
    %v124 = vld [vmem:[#allocation7 + $0x110] sm:$0xf]
    %v125 = vld [vmem:[#allocation7 + $0x114] sm:$0xf]
    %v126 = vld [vmem:[#allocation7 + $0x118] sm:$0xf]
    %v127 = vld [vmem:[#allocation7 + $0x11c] sm:$0xf]
    %v128 = vld [vmem:[#allocation7 + $0x120] sm:$0xf]
    %v129 = vld [vmem:[#allocation7 + $0x124] sm:$0xf]
    %v130 = vld [vmem:[#allocation7 + $0x128] sm:$0xf]
    %v131 = vld [vmem:[#allocation7 + $0x12c] sm:$0xf]
    %v132 = vld [vmem:[#allocation7 + $0x130] sm:$0xf]
    %v133 = vld [vmem:[#allocation7 + $0x134] sm:$0xf]
    %v134 = vld [vmem:[#allocation7 + $0x138] sm:$0xf]
    %v135 = vld [vmem:[#allocation7 + $0x13c] sm:$0xf]
    %v136 = vld [vmem:[#allocation7 + $0x140] sm:$0xf]
    %v137 = vld [vmem:[#allocation7 + $0x144] sm:$0xf]
    %v138 = vld [vmem:[#allocation7 + $0x148] sm:$0xf]
    %v139 = vld [vmem:[#allocation7 + $0x14c] sm:$0xf]
    %v140 = vld [vmem:[#allocation7 + $0x150] sm:$0xf]
    %v141 = vld [vmem:[#allocation7 + $0x154] sm:$0xf]
    %v142 = vld [vmem:[#allocation7 + $0x158] sm:$0xf]
    %v143 = vld [vmem:[#allocation7 + $0x15c] sm:$0xf]
    %v144 = vld [vmem:[#allocation7 + $0x160] sm:$0xf]
    %v145 = vld [vmem:[#allocation7 + $0x164] sm:$0xf]
    %v146 = vld [vmem:[#allocation7 + $0x168] sm:$0xf]
    %v147 = vld [vmem:[#allocation7 + $0x16c] sm:$0xf]
    %v148 = vld [vmem:[#allocation7 + $0x170] sm:$0xf]
    %v149 = vld [vmem:[#allocation7 + $0x174] sm:$0xf]
    %v150 = vld [vmem:[#allocation7 + $0x178] sm:$0xf]
    %v151 = vld [vmem:[#allocation7 + $0x17c] sm:$0xf]
    %v152 = vld [vmem:[#allocation7 + $0x180] sm:$0xf]
    %v153 = vld [vmem:[#allocation7 + $0x184] sm:$0xf]
    %v154 = vld [vmem:[#allocation7 + $0x188] sm:$0xf]
    %v155 = vld [vmem:[#allocation7 + $0x18c] sm:$0xf]
    %v156 = vld [vmem:[#allocation7 + $0x190] sm:$0xf]
    %v157 = vld [vmem:[#allocation7 + $0x194] sm:$0xf]
    %v158 = vld [vmem:[#allocation7 + $0x198] sm:$0xf]
    %v159 = vld [vmem:[#allocation7 + $0x19c] sm:$0xf]
    %v160 = vld [vmem:[#allocation7 + $0x1a0] sm:$0xf]
    %v161 = vld [vmem:[#allocation7 + $0x1a4] sm:$0xf]
    %v162 = vld [vmem:[#allocation7 + $0x1a8] sm:$0xf]
    %v163 = vld [vmem:[#allocation7 + $0x1ac] sm:$0xf]
    %v164 = vld [vmem:[#allocation7 + $0x1b0] sm:$0xf]
    %v165 = vld [vmem:[#allocation7 + $0x1b4] sm:$0xf]
    %v166 = vld [vmem:[#allocation7 + $0x1b8] sm:$0xf]
    %v167 = vld [vmem:[#allocation7 + $0x1bc] sm:$0xf]
    %v168 = vld [vmem:[#allocation7 + $0x1c0] sm:$0xf]
    %v169 = vld [vmem:[#allocation7 + $0x1c4] sm:$0xf]
    %v170 = vld [vmem:[#allocation7 + $0x1c8] sm:$0xf]
    %v171 = vld [vmem:[#allocation7 + $0x1cc] sm:$0xf]
    %v172 = vld [vmem:[#allocation7 + $0x1d0] sm:$0xf]
    %v173 = vld [vmem:[#allocation7 + $0x1d4] sm:$0xf]
    %v174 = vld [vmem:[#allocation7 + $0x1d8] sm:$0xf]
    %v175 = vld [vmem:[#allocation7 + $0x1dc] sm:$0xf]
    %v176 = vld [vmem:[#allocation7 + $0x1e0] sm:$0xf]
    %v177 = vld [vmem:[#allocation7 + $0x1e4] sm:$0xf]
    %v178 = vld [vmem:[#allocation7 + $0x1e8] sm:$0xf]
    %v179 = vld [vmem:[#allocation7 + $0x1ec] sm:$0xf]
    %v180 = vld [vmem:[#allocation7 + $0x1f0] sm:$0xf]
    %v181 = vld [vmem:[#allocation7 + $0x1f4] sm:$0xf]
    %v182 = vld [vmem:[#allocation7 + $0x1f8] sm:$0xf]
    %v183 = vld [vmem:[#allocation7 + $0x1fc] sm:$0xf]
    %v188 = vunpack.c.l.b16 %v52
    %v189 = vunpack.c.h.b16 %v52
    %v190 = vunpack.c.l.b16 %v53
    %v191 = vunpack.c.h.b16 %v53
    %v192 = vunpack.c.l.b16 %v54
    %v193 = vunpack.c.h.b16 %v54
    %v194 = vunpack.c.l.b16 %v55
    %v195 = vunpack.c.h.b16 %v55
    %v196 = vpack.c.b16 %v188, %v188
    %v197 = vpack.c.b16 %v189, %v189
    %v198 = vpack.c.b16 %v190, %v190
    %v199 = vpack.c.b16 %v191, %v191
    %v200 = vpack.c.b16 %v192, %v192
    %v201 = vpack.c.b16 %v193, %v193
    %v202 = vpack.c.b16 %v194, %v194
    %v203 = vpack.c.b16 %v195, %v195
    %v340 = vunpack.c.l.b16 %v56
    %v341 = vunpack.c.l.b16 %v57
    %v342 = vunpack.c.l.b16 %v58
    %v343 = vunpack.c.l.b16 %v59
    %v344 = vunpack.c.l.b16 %v60
    %v345 = vunpack.c.l.b16 %v61
    %v346 = vunpack.c.l.b16 %v62
    %v347 = vunpack.c.l.b16 %v63
    %v348 = vunpack.c.l.b16 %v64
    %v349 = vunpack.c.l.b16 %v65
    %v350 = vunpack.c.l.b16 %v66
    %v351 = vunpack.c.l.b16 %v67
    %v352 = vunpack.c.l.b16 %v68
    %v353 = vunpack.c.l.b16 %v69
    %v354 = vunpack.c.l.b16 %v70
    %v355 = vunpack.c.l.b16 %v71
    %v356 = vunpack.c.l.b16 %v72
    %v357 = vunpack.c.l.b16 %v73
    %v358 = vunpack.c.l.b16 %v74
    %v359 = vunpack.c.l.b16 %v75
    %v360 = vunpack.c.l.b16 %v76
    %v361 = vunpack.c.l.b16 %v77
    %v362 = vunpack.c.l.b16 %v78
    %v363 = vunpack.c.l.b16 %v79
    %v364 = vunpack.c.l.b16 %v80
    %v365 = vunpack.c.l.b16 %v81
    %v366 = vunpack.c.l.b16 %v82
    %v367 = vunpack.c.l.b16 %v83
    %v368 = vunpack.c.l.b16 %v84
    %v369 = vunpack.c.l.b16 %v85
    %v370 = vunpack.c.l.b16 %v86
    %v371 = vunpack.c.l.b16 %v87
    %v372 = vunpack.c.l.b16 %v88
    %v373 = vunpack.c.l.b16 %v89
    %v374 = vunpack.c.l.b16 %v90
    %v375 = vunpack.c.l.b16 %v91
    %v376 = vunpack.c.l.b16 %v92
    %v377 = vunpack.c.l.b16 %v93
    %v378 = vunpack.c.l.b16 %v94
    %v379 = vunpack.c.l.b16 %v95
    %v380 = vunpack.c.l.b16 %v96
    %v381 = vunpack.c.l.b16 %v97
    %v382 = vunpack.c.l.b16 %v98
    %v383 = vunpack.c.l.b16 %v99
    %v384 = vunpack.c.l.b16 %v100
    %v385 = vunpack.c.l.b16 %v101
    %v386 = vunpack.c.l.b16 %v102
    %v387 = vunpack.c.l.b16 %v103
    %v388 = vunpack.c.l.b16 %v104
    %v389 = vunpack.c.l.b16 %v105
    %v390 = vunpack.c.l.b16 %v106
    %v391 = vunpack.c.l.b16 %v107
    %v392 = vunpack.c.l.b16 %v108
    %v393 = vunpack.c.l.b16 %v109
    %v394 = vunpack.c.l.b16 %v110
    %v395 = vunpack.c.l.b16 %v111
    %v396 = vunpack.c.l.b16 %v112
    %v397 = vunpack.c.l.b16 %v113
    %v398 = vunpack.c.l.b16 %v114
    %v399 = vunpack.c.l.b16 %v115
    %v400 = vunpack.c.l.b16 %v116
    %v401 = vunpack.c.l.b16 %v117
    %v402 = vunpack.c.l.b16 %v118
    %v403 = vunpack.c.l.b16 %v119
    %v404 = vunpack.c.l.b16 %v120
    %v405 = vunpack.c.l.b16 %v121
    %v406 = vunpack.c.l.b16 %v122
    %v407 = vunpack.c.l.b16 %v123
    %v408 = vunpack.c.l.b16 %v124
    %v409 = vunpack.c.l.b16 %v125
    %v410 = vunpack.c.l.b16 %v126
    %v411 = vunpack.c.l.b16 %v127
    %v412 = vunpack.c.l.b16 %v128
    %v413 = vunpack.c.l.b16 %v129
    %v414 = vunpack.c.l.b16 %v130
    %v415 = vunpack.c.l.b16 %v131
    %v416 = vunpack.c.l.b16 %v132
    %v417 = vunpack.c.l.b16 %v133
    %v418 = vunpack.c.l.b16 %v134
    %v419 = vunpack.c.l.b16 %v135
    %v420 = vunpack.c.l.b16 %v136
    %v421 = vunpack.c.l.b16 %v137
    %v422 = vunpack.c.l.b16 %v138
    %v423 = vunpack.c.l.b16 %v139
    %v424 = vunpack.c.l.b16 %v140
    %v425 = vunpack.c.l.b16 %v141
    %v426 = vunpack.c.l.b16 %v142
    %v427 = vunpack.c.l.b16 %v143
    %v428 = vunpack.c.l.b16 %v144
    %v429 = vunpack.c.l.b16 %v145
    %v430 = vunpack.c.l.b16 %v146
    %v431 = vunpack.c.l.b16 %v147
    %v432 = vunpack.c.l.b16 %v148
    %v433 = vunpack.c.l.b16 %v149
    %v434 = vunpack.c.l.b16 %v150
    %v435 = vunpack.c.l.b16 %v151
    %v436 = vunpack.c.l.b16 %v152
    %v437 = vunpack.c.l.b16 %v153
    %v438 = vunpack.c.l.b16 %v154
    %v439 = vunpack.c.l.b16 %v155
    %v440 = vunpack.c.l.b16 %v156
    %v441 = vunpack.c.l.b16 %v157
    %v442 = vunpack.c.l.b16 %v158
    %v443 = vunpack.c.l.b16 %v159
    %v444 = vunpack.c.l.b16 %v160
    %v445 = vunpack.c.l.b16 %v161
    %v446 = vunpack.c.l.b16 %v162
    %v447 = vunpack.c.l.b16 %v163
    %v448 = vunpack.c.l.b16 %v164
    %v449 = vunpack.c.l.b16 %v165
    %v450 = vunpack.c.l.b16 %v166
    %v451 = vunpack.c.l.b16 %v167
    %v452 = vunpack.c.l.b16 %v168
    %v453 = vunpack.c.l.b16 %v169
    %v454 = vunpack.c.l.b16 %v170
    %v455 = vunpack.c.l.b16 %v171
    %v456 = vunpack.c.l.b16 %v172
    %v457 = vunpack.c.l.b16 %v173
    %v458 = vunpack.c.l.b16 %v174
    %v459 = vunpack.c.l.b16 %v175
    %v460 = vunpack.c.l.b16 %v176
    %v461 = vunpack.c.l.b16 %v177
    %v462 = vunpack.c.l.b16 %v178
    %v463 = vunpack.c.l.b16 %v179
    %v464 = vunpack.c.l.b16 %v180
    %v465 = vunpack.c.l.b16 %v181
    %v466 = vunpack.c.l.b16 %v182
    %v467 = vunpack.c.l.b16 %v183
    %v468 = vpack.c.b16 %v341, %v340
    %v469 = vpack.c.b16 %v343, %v342
    %v470 = vpack.c.b16 %v345, %v344
    %v471 = vpack.c.b16 %v347, %v346
    %v472 = vpack.c.b16 %v349, %v348
    %v473 = vpack.c.b16 %v351, %v350
    %v474 = vpack.c.b16 %v353, %v352
    %v475 = vpack.c.b16 %v355, %v354
    %v476 = vpack.c.b16 %v357, %v356
    %v477 = vpack.c.b16 %v359, %v358
    %v478 = vpack.c.b16 %v361, %v360
    %v479 = vpack.c.b16 %v363, %v362
    %v480 = vpack.c.b16 %v365, %v364
    %v481 = vpack.c.b16 %v367, %v366
    %v482 = vpack.c.b16 %v369, %v368
    %v483 = vpack.c.b16 %v371, %v370
    %v484 = vpack.c.b16 %v373, %v372
    %v485 = vpack.c.b16 %v375, %v374
    %v486 = vpack.c.b16 %v377, %v376
    %v487 = vpack.c.b16 %v379, %v378
    %v488 = vpack.c.b16 %v381, %v380
    %v489 = vpack.c.b16 %v383, %v382
    %v490 = vpack.c.b16 %v385, %v384
    %v491 = vpack.c.b16 %v387, %v386
    %v492 = vpack.c.b16 %v389, %v388
    %v493 = vpack.c.b16 %v391, %v390
    %v494 = vpack.c.b16 %v393, %v392
    %v495 = vpack.c.b16 %v395, %v394
    %v496 = vpack.c.b16 %v397, %v396
    %v497 = vpack.c.b16 %v399, %v398
    %v498 = vpack.c.b16 %v401, %v400
    %v499 = vpack.c.b16 %v403, %v402
    %v500 = vpack.c.b16 %v405, %v404
    %v501 = vpack.c.b16 %v407, %v406
    %v502 = vpack.c.b16 %v409, %v408
    %v503 = vpack.c.b16 %v411, %v410
    %v504 = vpack.c.b16 %v413, %v412
    %v505 = vpack.c.b16 %v415, %v414
    %v506 = vpack.c.b16 %v417, %v416
    %v507 = vpack.c.b16 %v419, %v418
    %v508 = vpack.c.b16 %v421, %v420
    %v509 = vpack.c.b16 %v423, %v422
    %v510 = vpack.c.b16 %v425, %v424
    %v511 = vpack.c.b16 %v427, %v426
    %v512 = vpack.c.b16 %v429, %v428
    %v513 = vpack.c.b16 %v431, %v430
    %v514 = vpack.c.b16 %v433, %v432
    %v515 = vpack.c.b16 %v435, %v434
    %v516 = vpack.c.b16 %v437, %v436
    %v517 = vpack.c.b16 %v439, %v438
    %v518 = vpack.c.b16 %v441, %v440
    %v519 = vpack.c.b16 %v443, %v442
    %v520 = vpack.c.b16 %v445, %v444
    %v521 = vpack.c.b16 %v447, %v446
    %v522 = vpack.c.b16 %v449, %v448
    %v523 = vpack.c.b16 %v451, %v450
    %v524 = vpack.c.b16 %v453, %v452
    %v525 = vpack.c.b16 %v455, %v454
    %v526 = vpack.c.b16 %v457, %v456
    %v527 = vpack.c.b16 %v459, %v458
    %v528 = vpack.c.b16 %v461, %v460
    %v529 = vpack.c.b16 %v463, %v462
    %v530 = vpack.c.b16 %v465, %v464
    %v531 = vpack.c.b16 %v467, %v466
    %596 = vmatprep.subr.bf16.mxu0 0
    %597 = vmatpush1.bf16.msra.mxu0 %v468
    %598 = vmatprep.subr.bf16.mxu0 0
    %599 = vmatpush1.bf16.msra.mxu0 %v469
    %600 = vmatprep.subr.bf16.mxu0 0
    %601 = vmatpush1.bf16.msra.mxu0 %v470
    %602 = vmatprep.subr.bf16.mxu0 0
    %603 = vmatpush1.bf16.msra.mxu0 %v471
    %604 = vmatprep.subr.bf16.mxu0 0
    %605 = vmatpush1.bf16.msra.mxu0 %v472
    %606 = vmatprep.subr.bf16.mxu0 0
    %607 = vmatpush1.bf16.msra.mxu0 %v473
    %608 = vmatprep.subr.bf16.mxu0 0
    %609 = vmatpush1.bf16.msra.mxu0 %v474
    %610 = vmatprep.subr.bf16.mxu0 0
    %611 = vmatpush1.bf16.msra.mxu0 %v475
    %612 = vmatprep.subr.bf16.mxu0 0
    %613 = vmatpush1.bf16.msra.mxu0 %v476
    %614 = vmatprep.subr.bf16.mxu0 0
    %615 = vmatpush1.bf16.msra.mxu0 %v477
    %616 = vmatprep.subr.bf16.mxu0 0
    %617 = vmatpush1.bf16.msra.mxu0 %v478
    %618 = vmatprep.subr.bf16.mxu0 0
    %619 = vmatpush1.bf16.msra.mxu0 %v479
    %620 = vmatprep.subr.bf16.mxu0 0
    %621 = vmatpush1.bf16.msra.mxu0 %v480
    %622 = vmatprep.subr.bf16.mxu0 0
    %623 = vmatpush1.bf16.msra.mxu0 %v481
    %624 = vmatprep.subr.bf16.mxu0 0
    %625 = vmatpush1.bf16.msra.mxu0 %v482
    %626 = vmatprep.subr.bf16.mxu0 0
    %627 = vmatpush1.bf16.msra.mxu0 %v483
    %628 = vmatprep.mubr.bf16.mxu0 %v197
    %629 = vmatmul.mubr.bf16.gmra.mrb[0].mxu0 %v196
    %v630 = vpop.f32.mrb[0].mxu0
    %v631 = vadd.f32 0.0, %v630
    %v632 = vpop.f32.mrb[0].mxu0
    %v633 = vpop.f32.mrb[0].mxu0
    %v634 = vpop.f32.mrb[0].mxu0
    %635 = vdwg.mxu0
    %636 = vmatprep.subr.bf16.mxu0 0
    %637 = vmatpush1.bf16.msra.mxu0 %v484
    %638 = vmatprep.subr.bf16.mxu0 0
    %639 = vmatpush1.bf16.msra.mxu0 %v485
    %640 = vmatprep.subr.bf16.mxu0 0
    %641 = vmatpush1.bf16.msra.mxu0 %v486
    %642 = vmatprep.subr.bf16.mxu0 0
    %643 = vmatpush1.bf16.msra.mxu0 %v487
    %644 = vmatprep.subr.bf16.mxu0 0
    %645 = vmatpush1.bf16.msra.mxu0 %v488
    %646 = vmatprep.subr.bf16.mxu0 0
    %647 = vmatpush1.bf16.msra.mxu0 %v489
    %648 = vmatprep.subr.bf16.mxu0 0
    %649 = vmatpush1.bf16.msra.mxu0 %v490
    %650 = vmatprep.subr.bf16.mxu0 0
    %651 = vmatpush1.bf16.msra.mxu0 %v491
    %652 = vmatprep.subr.bf16.mxu0 0
    %653 = vmatpush1.bf16.msra.mxu0 %v492
    %654 = vmatprep.subr.bf16.mxu0 0
    %655 = vmatpush1.bf16.msra.mxu0 %v493
    %656 = vmatprep.subr.bf16.mxu0 0
    %657 = vmatpush1.bf16.msra.mxu0 %v494
    %658 = vmatprep.subr.bf16.mxu0 0
    %659 = vmatpush1.bf16.msra.mxu0 %v495
    %660 = vmatprep.subr.bf16.mxu0 0
    %661 = vmatpush1.bf16.msra.mxu0 %v496
    %662 = vmatprep.subr.bf16.mxu0 0
    %663 = vmatpush1.bf16.msra.mxu0 %v497
    %664 = vmatprep.subr.bf16.mxu0 0
    %665 = vmatpush1.bf16.msra.mxu0 %v498
    %666 = vmatprep.subr.bf16.mxu0 0
    %667 = vmatpush1.bf16.msra.mxu0 %v499
    %668 = vmatprep.mubr.bf16.mxu0 %v199
    %669 = vmatmul.mubr.bf16.gmra.mrb[0].mxu0 %v198
    %v670 = vpop.f32.mrb[0].mxu0
    %v671 = vadd.f32 %v631, %v670
    %v672 = vpop.f32.mrb[0].mxu0
    %v673 = vpop.f32.mrb[0].mxu0
    %v674 = vpop.f32.mrb[0].mxu0
    %675 = vdwg.mxu0
    %676 = vmatprep.subr.bf16.mxu0 0
    %677 = vmatpush1.bf16.msra.mxu0 %v500
    %678 = vmatprep.subr.bf16.mxu0 0
    %679 = vmatpush1.bf16.msra.mxu0 %v501
    %680 = vmatprep.subr.bf16.mxu0 0
    %681 = vmatpush1.bf16.msra.mxu0 %v502
    %682 = vmatprep.subr.bf16.mxu0 0
    %683 = vmatpush1.bf16.msra.mxu0 %v503
    %684 = vmatprep.subr.bf16.mxu0 0
    %685 = vmatpush1.bf16.msra.mxu0 %v504
    %686 = vmatprep.subr.bf16.mxu0 0
    %687 = vmatpush1.bf16.msra.mxu0 %v505
    %688 = vmatprep.subr.bf16.mxu0 0
    %689 = vmatpush1.bf16.msra.mxu0 %v506
    %690 = vmatprep.subr.bf16.mxu0 0
    %691 = vmatpush1.bf16.msra.mxu0 %v507
    %692 = vmatprep.subr.bf16.mxu0 0
    %693 = vmatpush1.bf16.msra.mxu0 %v508
    %694 = vmatprep.subr.bf16.mxu0 0
    %695 = vmatpush1.bf16.msra.mxu0 %v509
    %696 = vmatprep.subr.bf16.mxu0 0
    %697 = vmatpush1.bf16.msra.mxu0 %v510
    %698 = vmatprep.subr.bf16.mxu0 0
    %699 = vmatpush1.bf16.msra.mxu0 %v511
    %700 = vmatprep.subr.bf16.mxu0 0
    %701 = vmatpush1.bf16.msra.mxu0 %v512
    %702 = vmatprep.subr.bf16.mxu0 0
    %703 = vmatpush1.bf16.msra.mxu0 %v513
    %704 = vmatprep.subr.bf16.mxu0 0
    %705 = vmatpush1.bf16.msra.mxu0 %v514
    %706 = vmatprep.subr.bf16.mxu0 0
    %707 = vmatpush1.bf16.msra.mxu0 %v515
    %708 = vmatprep.mubr.bf16.mxu0 %v201
    %709 = vmatmul.mubr.bf16.gmra.mrb[0].mxu0 %v200
    %v710 = vpop.f32.mrb[0].mxu0
    %v711 = vadd.f32 %v671, %v710
    %v712 = vpop.f32.mrb[0].mxu0
    %v713 = vpop.f32.mrb[0].mxu0
    %v714 = vpop.f32.mrb[0].mxu0
    %715 = vdwg.mxu0
    %716 = vmatprep.subr.bf16.mxu0 0
    %717 = vmatpush1.bf16.msra.mxu0 %v516
    %718 = vmatprep.subr.bf16.mxu0 0
    %719 = vmatpush1.bf16.msra.mxu0 %v517
    %720 = vmatprep.subr.bf16.mxu0 0
    %721 = vmatpush1.bf16.msra.mxu0 %v518
    %722 = vmatprep.subr.bf16.mxu0 0
    %723 = vmatpush1.bf16.msra.mxu0 %v519
    %724 = vmatprep.subr.bf16.mxu0 0
    %725 = vmatpush1.bf16.msra.mxu0 %v520
    %726 = vmatprep.subr.bf16.mxu0 0
    %727 = vmatpush1.bf16.msra.mxu0 %v521
    %728 = vmatprep.subr.bf16.mxu0 0
    %729 = vmatpush1.bf16.msra.mxu0 %v522
    %730 = vmatprep.subr.bf16.mxu0 0
    %731 = vmatpush1.bf16.msra.mxu0 %v523
    %732 = vmatprep.subr.bf16.mxu0 0
    %733 = vmatpush1.bf16.msra.mxu0 %v524
    %734 = vmatprep.subr.bf16.mxu0 0
    %735 = vmatpush1.bf16.msra.mxu0 %v525
    %736 = vmatprep.subr.bf16.mxu0 0
    %737 = vmatpush1.bf16.msra.mxu0 %v526
    %738 = vmatprep.subr.bf16.mxu0 0
    %739 = vmatpush1.bf16.msra.mxu0 %v527
    %740 = vmatprep.subr.bf16.mxu0 0
    %741 = vmatpush1.bf16.msra.mxu0 %v528
    %742 = vmatprep.subr.bf16.mxu0 0
    %743 = vmatpush1.bf16.msra.mxu0 %v529
    %744 = vmatprep.subr.bf16.mxu0 0
    %745 = vmatpush1.bf16.msra.mxu0 %v530
    %746 = vmatprep.subr.bf16.mxu0 0
    %747 = vmatpush1.bf16.msra.mxu0 %v531
    %748 = vmatprep.mubr.bf16.mxu0 %v203
    %749 = vmatmul.mubr.bf16.gmra.mrb[0].mxu0 %v202
    %v750 = vpop.f32.mrb[0].mxu0
    %v751 = vadd.f32 %v711, %v750
    %v752 = vpop.f32.mrb[0].mxu0
    %v753 = vpop.f32.mrb[0].mxu0
    %v754 = vpop.f32.mrb[0].mxu0
    %755 = vdwg.mxu0
    %v756 = vadd.f32 %v51, %v751
    %757 = vst [vmem:[#allocation2] sm:$0xff] %v756
    // Predicated region
    $region30: #{tpu_custom_call.1} parent=1 // pred_check
      %p758 = pneg %p46
    $region31: #{tpu_custom_call.1} parent=1 // pred_check_branch
      %760 = sbr.rel (%p758) target = $region33
    $region32: #{tpu_custom_call.1} parent=1 // pred_region
      %v761 = vld [vmem:[#allocation2] sm:$0xff]
      %v762 = vld [vmem:[%s2] sm:$0x1]
      %v764 = vlaneseq
      %v765 = vshrl.u32 %v764, 7
      %v766 = vsub.s32 0, %v765
      %v767 = vrot.slane %v762, %v766
      %v769 = vadd.f32 %v761, %v767
      %v770 = vlaneseq
      %v771 = vand.u32 %v770, 127
      %vm772 = vcmp.lt.s32.totalorder %v771, 10
      %v773 = vsel %vm772, %v769, -inf
      %774 = vmax.xlane.f32.xlu0 %v773
      %v775 = vpop.xlane.xlu0 %774
      %v776 = vsub.f32 %v773, %v775
      %v777 = vmul.f32 %v776, 1.442695
      %v778 = vpow.pop %v777
      %779 = vadd.xlane.f32.xlu0 %v778
      %v780 = vpop.xlane.xlu0 %779
      %v781 = vlog2.pop %v780
      %v782 = vmul.f32 %v781, 0.6931472
      %v783 = vadd.f32 %v775, %v782
      %v784 = vsub.f32 %v773, %v783
      %v785 = vmax.f32 %v784, -36.841362
      %s786 = sld [smem:[#allocation3]]
      %v787 = vstv %s786
      %v788 = vmul.f32 %v785, %v787
      %789 = vst [vmem:[#allocation9] sm:$0xff] %v788
    $region33: #{tpu_custom_call.1} parent=1 // pred_fallthru
      _
    // Predicated region
    $region34: #{tpu_custom_call.1} parent=1 // pred_check
      _
    $region35: #{tpu_custom_call.1} parent=1 // pred_check_branch
      %791 = sbr.rel (0) target = $region37
    $region36: #{tpu_custom_call.1} parent=1 // pred_region
      %s793 = ssub.s32 128, 128
      %794 = vsyncadd [#allocation6], %s793
      %s796 = sshll.u32 [#allocation9], 4
      %s797 = int_to_ptr.vmem [resolvable:$true] %s796
      %799 = dma.vmem_to_hbm [thread:$0]  %s797, 128, %s4, [#allocation6]
    $region37: #{tpu_custom_call.1} parent=1 // pred_fallthru
      _
    // Predicated region
    $region38: #{tpu_custom_call.1} parent=1 // pred_check
      _
    $region39: #{tpu_custom_call.1} parent=1 // pred_check_branch
      %801 = sbr.rel (0) target = $region41
    $region40: #{tpu_custom_call.1} parent=1 // pred_region
      %802 = dma.done [#allocation6], 128
    $region41: #{tpu_custom_call.1} parent=1 // pred_fallthru
      _
    %803 = vsyncpa [#allocation5], 1
    %804 = vsyncpa [#allocation8], 1
    %805 = vsyncpa [#allocation6], 1

</llo_original>
